<compile_context>
chip_gen: v7x
topology: tpu7x:2x2x1
jax: 0.10.0
libtpu: 0.0.40
codegen_flags: <defaults>
</compile_context>

<pallas_src>
import jax
import jax.numpy as jnp
from jax.experimental import pallas as pl
from jax.experimental.pallas import tpu as pltpu


# ----------------------------------------------------------------------------
# Kernel
# ----------------------------------------------------------------------------
def affine_kernel(p_ref, x_ref, o_ref):
    """out^T = W^T @ x^T + b, batch on the 128-lane axis (pure VPU).

    p_ref: VMEM (d_out, d_in + 1) f32 -- cols [0, d_in) = W^T, col d_in = bias.
    x_ref: VMEM (d_in, TN)  f32 -- x^T tile, batch on lanes.
    o_ref: VMEM (d_out, TN) f32 -- out^T tile, batch on lanes.
    """
    d_in = x_ref.shape[0]
    acc = p_ref[:, d_in:d_in + 1]          # (d_out, 1) bias, lane-broadcasts
    for i in range(d_in):                  # unrolled: d_in == 2
        # (d_out, 1) * (1, TN) -> (d_out, TN): broadcast-FMA chain on the VPU.
        acc = acc + p_ref[:, i:i + 1] * x_ref[i:i + 1, :]
    o_ref[...] = acc.astype(o_ref.dtype)   # single lane-dense full-tile store


# ----------------------------------------------------------------------------
# Parameter folding (3 chained Linears -> one affine map)
# ----------------------------------------------------------------------------
def fold_params(params):
    """Fold the 3 bias-chained Linears into one affine map: y = x @ w + b."""
    w1t, b1, w2t, b2, w3t, b3 = params
    w = (w1t @ w2t) @ w3t              # (2, 4)
    b = (b1 @ w2t + b2) @ w3t + b3     # (1, 4)
    return w, b


# ----------------------------------------------------------------------------
# Tiling / VMEM policy
# ----------------------------------------------------------------------------
_MIN_PARALLEL_TILE = 64 * 1024   # lanes; a half-step still carries ~1.5 MiB HBM
_XLA_CROSSOVER_ROWS = 1 << 17    # below this, the fused XLA affine beats the
                                 # pallas_call fixed cost (tune per generation)


def _tile_and_vmem_limit():
    """Generation-aware lane-tile size and scoped-VMEM limit.

    Double-buffered pipeline footprint ~= 128*TN bytes ((2,TN) and (4,TN) f32
    blocks, each sublane-padded to 8 rows).  Budget ~half of physical VMEM:
    v5e/v6e (128 MiB) and v7x (64 MiB) all land at the 256K-lane cap, and the
    explicit vmem_limit_bytes lifts v5e/v6e's small scoped defaults.
    """
    try:
        vmem_bytes = int(pltpu.get_tpu_info().vmem_capacity_bytes)
    except Exception:
        vmem_bytes = 64 << 20      # be conservative: assume the smallest part
    budget = vmem_bytes // 2
    tn = min((budget // 128) // 128 * 128, 256 * 1024)
    tn = max(tn, 8 * 1024)
    vmem_limit = min(budget + (4 << 20), vmem_bytes)
    return tn, vmem_limit


# ----------------------------------------------------------------------------
# Pallas wrapper (transposed layout: batch on lanes)
# ----------------------------------------------------------------------------
def _pallas_affine_t(x_t, w, b, *, tn=None):
    """out^T = W^T @ x^T + b.  x_t: (d_in, N) f32 -> (d_out, N128) f32."""
    d_in, n = x_t.shape
    d_out = w.shape[1]

    auto_tn, vmem_limit = _tile_and_vmem_limit()
    if tn is None:
        tn = auto_tn
    tn = max(128, (tn // 128) * 128)

    # Pad N only to the 128-lane granule (no full-tile zero copy); any ragged
    # last grid block is masked by the Pallas pipeline.
    n_pad = ((n + 127) // 128) * 128
    if n_pad != n:
        x_t = jnp.pad(x_t, ((0, 0), (0, n_pad - n)))

    tn_eff = min(tn, n_pad)
    # Prefer >= 2 grid steps once each step still amortizes the fixed per-step
    # cost, so the "parallel" axis actually feeds both v7x TensorCores.
    if n_pad >= 2 * _MIN_PARALLEL_TILE:
        half = (((n_pad + 1) // 2 + 127) // 128) * 128
        tn_eff = min(tn_eff, half)
    grid = pl.cdiv(n_pad, tn_eff)

    # Pack all parameters into one tiny resident VMEM block: (d_out, d_in + 1).
    packed = jnp.concatenate([w.T, b.reshape(d_out, 1)], axis=1).astype(jnp.float32)

    out_t = pl.pallas_call(
        affine_kernel,
        out_shape=jax.ShapeDtypeStruct((d_out, n_pad), x_t.dtype),
        grid=(grid,),
        in_specs=[
            pl.BlockSpec((d_out, d_in + 1), lambda i: (0, 0)),  # params, resident
            pl.BlockSpec((d_in, tn_eff), lambda i: (0, i)),     # x^T lane tile
        ],
        out_specs=pl.BlockSpec((d_out, tn_eff), lambda i: (0, i)),
        compiler_params=pltpu.CompilerParams(
            dimension_semantics=("parallel",),      # 2-TC sharding on v7x
            vmem_limit_bytes=int(vmem_limit),
        ),
        cost_estimate=pl.CostEstimate(
            flops=2 * d_in * d_out * n,             # ~16N
            transcendentals=0,
            bytes_accessed=4 * n * (d_in + d_out),  # ~24N
        ),
    )(packed, x_t)
    return out_t


# ----------------------------------------------------------------------------
# Public entry points
# ----------------------------------------------------------------------------
def model_forward_t(x_t, params, *, tn=None):
    """Tuned transposed contract: x_t (2, N) -> out^T (4, N).

    No wrapper-side transpose/pad passes -> total HBM traffic ~24N bytes.
    """
    w, b = fold_params(params)
    n = x_t.shape[1]
    out_t = _pallas_affine_t(x_t, w, b, tn=tn)
    return out_t[:, :n]


def model_forward(x, params, *, tn=None, force_pallas=False):
    """PyTorch contract: x (N, 2) f32 -> (N, 4) f32.

    Equivalent to layers(layers_2(layers_1(x))).  Small batches take the fused
    XLA path; large batches go through the Pallas kernel (paying one transpose
    in and one transpose out -- use `model_forward_t` to avoid them).
    """
    w, b = fold_params(params)
    n = x.shape[0]
    if not force_pallas and n < _XLA_CROSSOVER_ROWS:
        # Launch/DMA-overhead-dominated regime: let XLA fuse the tiny affine map.
        return x @ w + b
    out_t = _pallas_affine_t(x.T, w, b, tn=tn)
    return out_t[:, :n].T


# ----------------------------------------------------------------------------
# Parameter init + un-fused reference
# ----------------------------------------------------------------------------
def init_params(key):
    """Deterministic PyTorch-style Linear init: U(-1/sqrt(fan_in), +1/sqrt(fan_in))."""
    def linear(key, fan_in, fan_out):
        kw, kb = jax.random.split(key)
        bound = 1.0 / jnp.sqrt(jnp.float32(fan_in))
        w_t = jax.random.uniform(kw, (fan_in, fan_out), jnp.float32, -bound, bound)
        b = jax.random.uniform(kb, (1, fan_out), jnp.float32, -bound, bound)
        return w_t, b

    k1, k2, k3 = jax.random.split(key, 3)
    w1t, b1 = linear(k1, 2, 4)   # layers_1: Linear(2, 4)
    w2t, b2 = linear(k2, 4, 4)   # layers_2 (repaired): Linear(4, 4)
    w3t, b3 = linear(k3, 4, 4)   # layers:   Linear(4, 4)
    return (w1t, b1, w2t, b2, w3t, b3)


def reference_forward(x, params):
    """Un-fused 3-layer chain (validates the algebraic fold + the kernel)."""
    w1t, b1, w2t, b2, w3t, b3 = params
    h = x @ w1t + b1
    h = h @ w2t + b2
    return h @ w3t + b3


if __name__ == "__main__":
    key = jax.random.PRNGKey(0)
    kx, kp = jax.random.split(key)
    params = init_params(kp)

    # Spec shape: torch.randn(2, 2). Force the Pallas path so the kernel runs.
    x_small = jax.random.normal(kx, (2, 2), jnp.float32)
    out_small = jax.block_until_ready(model_forward(x_small, params, force_pallas=True))
    ref_small = reference_forward(x_small, params)
    assert out_small.shape == (2, 4)
    assert jnp.allclose(out_small, ref_small, atol=1e-5, rtol=1e-5)

    # Medium batch with a small explicit tile -> multi-step, pipelined grid.
    x_med = jax.random.normal(kx, (8192, 2), jnp.float32)
    out_med = jax.block_until_ready(
        model_forward(x_med, params, tn=1024, force_pallas=True))
    ref_med = reference_forward(x_med, params)
    assert out_med.shape == (8192, 4)
    assert jnp.allclose(out_med, ref_med, atol=1e-5, rtol=1e-5)

    # Tuned transposed contract at the auto-selected (generation-aware) tile.
    out_t = jax.block_until_ready(model_forward_t(x_med.T, params))
    assert out_t.shape == (4, 8192)
    assert jnp.allclose(out_t.T, ref_med, atol=1e-5, rtol=1e-5)

    print("KERNEL_OK")
</pallas_src>

<mosaic_0001>
module attributes {stable_mosaic.version = 11 : i64} {
  func.func @affine_kernel(%arg0: i32, %arg1: memref<4x3xf32, #tpu.memory_space<vmem>>, %arg2: memref<2x128xf32, #tpu.memory_space<vmem>>, %arg3: memref<4x128xf32, #tpu.memory_space<vmem>>) attributes {dimension_semantics = [#tpu.dimension_semantics<parallel>], iteration_bounds = array<i64: 1>, scalar_prefetch = 0 : i64, scratch_operands = 0 : i64, tpu.core_type = #tpu.core_type<tc>, window_params = [{pipeline_mode = #tpu.pipeline_mode<synchronous>, transform_indices = @transform_0, window_bounds = array<i64: 4, 3>}, {transform_indices = @transform_1, window_bounds = array<i64: 2, 128>}, {transform_indices = @transform_2, window_bounds = array<i64: 4, 128>}]} {
    %c0 = arith.constant 0 : index
    %c2 = arith.constant 2 : index
    %0 = vector.load %arg1[%c0, %c2] : memref<4x3xf32, #tpu.memory_space<vmem>>, vector<4x1xf32>
    %c0_0 = arith.constant 0 : index
    %c0_1 = arith.constant 0 : index
    %1 = vector.load %arg1[%c0_0, %c0_1] : memref<4x3xf32, #tpu.memory_space<vmem>>, vector<4x1xf32>
    %c0_2 = arith.constant 0 : index
    %c0_3 = arith.constant 0 : index
    %2 = vector.load %arg2[%c0_2, %c0_3] : memref<2x128xf32, #tpu.memory_space<vmem>>, vector<1x128xf32>
    %3 = vector.broadcast %1 : vector<4x1xf32> to vector<4x128xf32>
    %4 = vector.broadcast %2 : vector<1x128xf32> to vector<4x128xf32>
    %5 = arith.mulf %3, %4 : vector<4x128xf32>
    %6 = vector.broadcast %0 : vector<4x1xf32> to vector<4x128xf32>
    %7 = arith.addf %6, %5 : vector<4x128xf32>
    %c0_4 = arith.constant 0 : index
    %c1 = arith.constant 1 : index
    %8 = vector.load %arg1[%c0_4, %c1] : memref<4x3xf32, #tpu.memory_space<vmem>>, vector<4x1xf32>
    %c1_5 = arith.constant 1 : index
    %c0_6 = arith.constant 0 : index
    %9 = vector.load %arg2[%c1_5, %c0_6] : memref<2x128xf32, #tpu.memory_space<vmem>>, vector<1x128xf32>
    %10 = vector.broadcast %8 : vector<4x1xf32> to vector<4x128xf32>
    %11 = vector.broadcast %9 : vector<1x128xf32> to vector<4x128xf32>
    %12 = arith.mulf %10, %11 : vector<4x128xf32>
    %13 = arith.addf %7, %12 : vector<4x128xf32>
    %c0_7 = arith.constant 0 : index
    %c0_8 = arith.constant 0 : index
    %14 = vector.load %arg3[%c0_7, %c0_8] : memref<4x128xf32, #tpu.memory_space<vmem>>, vector<4x128xf32>
    tpu.vector_store %arg3[%c0_7, %c0_8], %13 {strides = array<i32>} : memref<4x128xf32, #tpu.memory_space<vmem>>, vector<4x128xf32>,
    return
  }
  func.func @transform_0(%arg0: i32) -> (i32, i32) {
    %c0_i32 = arith.constant 0 : i32
    %c0_i32_0 = arith.constant 0 : i32
    %c0_i32_1 = arith.constant 0 : i32
    return %c0_i32, %c0_i32_0 : i32, i32
  }
  func.func @transform_1(%arg0: i32) -> (i32, i32) {
    %c0_i32 = arith.constant 0 : i32
    %c0_i32_0 = arith.constant 0 : i32
    return %c0_i32, %arg0 : i32, i32
  }
  func.func @transform_2(%arg0: i32) -> (i32, i32) {
    %c0_i32 = arith.constant 0 : i32
    %c0_i32_0 = arith.constant 0 : i32
    return %c0_i32, %arg0 : i32, i32
  }
}

</mosaic_0001>

<llo_original>
// kernel: tpu_custom_call.1
$region0: #{tpu_custom_call.1}
  #allocation0 [shape = 'u32[]', space=smem, size = 0x4, offset = 0x4, fixed_abs, tag = 'smem constant byte address 0x4 - core index']
  #allocation1 [shape = 'u32[144,128]{1,0:T(1,128)}', space=vmem, size = 0x12000, scoped, tag = 'internal scratch']
  %s0 = inlined_call_operand.hbm [shape: f32[4,3], index: 0, kind: input, shape index: {}]
  %s1 = inlined_call_operand.vmem [shape: f32[2,128], index: 1, kind: input, shape index: {}]
  %s2 = inlined_call_operand.hbm [shape: f32[4,128], index: 2, kind: output, shape index: {}]
  %s3 = sld [smem:[#allocation0]]
  $region22: #{tpu_custom_call.1} parent=0
    _
  %s5 = ssub.s32 1, %s3
  %s6 = scalar_select 0, %s5, %s3
  $region1: #{tpu_custom_call.1} parent=0
    #allocation2 [shape = 'u8[2048]{0}', space=vmem, size = 0x800, scoped, tag = 'input window, operand 0, single buffered']
    #allocation3 [shape = 's32[1]{0}', space=sflag, size = 0x4, scoped, tag = 'scoped memory for tpu_custom_call.1']
    #allocation4 [shape = 's32[1]{0}', space=sflag, size = 0x4, scoped, tag = 'scoped memory for tpu_custom_call.1']
    #allocation5 [shape = 'u8[2048]{0}', space=vmem, size = 0x800, scoped, tag = 'output window, operand 0, single buffered']
    %7 = vsyncpa [#allocation3], 0
    %8 = vsyncpa [#allocation4], 0
    // Predicated region
    $region2: #{tpu_custom_call.1} parent=1 // pred_check
      _
    $region3: #{tpu_custom_call.1} parent=1 // pred_check_branch
      %10 = sbr.rel (0) target = $region5
    $region4: #{tpu_custom_call.1} parent=1 // pred_region
      %s12 = ssub.s32 64, 64
      %13 = vsyncadd [#allocation3], %s12
      %s15 = sshll.u32 [#allocation2], 4
      %s16 = int_to_ptr.vmem [resolvable:$true] %s15
      %18 = dma.hbm_to_vmem [thread:$0]  %s0, 64, %s16, [#allocation3]
    $region5: #{tpu_custom_call.1} parent=1 // pred_fallthru
      _
    // Predicated region
    $region6: #{tpu_custom_call.1} parent=1 // pred_check
      _
    $region7: #{tpu_custom_call.1} parent=1 // pred_check_branch
      %20 = sbr.rel (0) target = $region9
    $region8: #{tpu_custom_call.1} parent=1 // pred_region
      _
    $region9: #{tpu_custom_call.1} parent=1 // pred_fallthru
      _
    // Predicated region
    $region10: #{tpu_custom_call.1} parent=1 // pred_check
      _
    $region11: #{tpu_custom_call.1} parent=1 // pred_check_branch
      %22 = sbr.rel (0) target = $region13
    $region12: #{tpu_custom_call.1} parent=1 // pred_region
      %23 = dma.done [#allocation3], 64
    $region13: #{tpu_custom_call.1} parent=1 // pred_fallthru
      _
    %v24 = vld [vmem:[#allocation2] sm:$0xf]
    %v25 = vld [vmem:[%s1] sm:$0x1]
    %27 = vset.pattern.permute.xlu0 0
    %28 = vperm.xlu0 %27, %v24
    %v29 = vpop.permute.xlu0 %28
    %v31 = vlaneseq
    %v32 = vshrl.u32 %v31, 7
    %v33 = vsub.s32 0, %v32
    %v34 = vrot.slane %v25, %v33
    %v35 = vmul.f32 %v29, %v34
    %36 = vset.pattern.permute.xlu0 2
    %37 = vperm.xlu0 %36, %v24
    %v38 = vpop.permute.xlu0 %37
    %v40 = vadd.f32 %v38, %v35
    %v41 = vld [vmem:[%s1 + $0x1] sm:$0x1]
    %42 = vset.pattern.permute.xlu0 1
    %43 = vperm.xlu0 %42, %v24
    %v44 = vpop.permute.xlu0 %43
    %v46 = vlaneseq
    %v47 = vshrl.u32 %v46, 7
    %v48 = vsub.s32 0, %v47
    %v49 = vrot.slane %v41, %v48
    %v50 = vmul.f32 %v44, %v49
    %v51 = vadd.f32 %v40, %v50
    %52 = vst [vmem:[#allocation5] sm:$0xf] %v51
    // Predicated region
    $region14: #{tpu_custom_call.1} parent=1 // pred_check
      _
    $region15: #{tpu_custom_call.1} parent=1 // pred_check_branch
      %54 = sbr.rel (0) target = $region17
    $region16: #{tpu_custom_call.1} parent=1 // pred_region
      %s56 = ssub.s32 64, 64
      %57 = vsyncadd [#allocation4], %s56
      %s59 = sshll.u32 [#allocation5], 4
      %s60 = int_to_ptr.vmem [resolvable:$true] %s59
      %62 = dma.vmem_to_hbm [thread:$0]  %s60, 64, %s2, [#allocation4]
    $region17: #{tpu_custom_call.1} parent=1 // pred_fallthru
      _
    // Predicated region
    $region18: #{tpu_custom_call.1} parent=1 // pred_check
      _
    $region19: #{tpu_custom_call.1} parent=1 // pred_check_branch
      %64 = sbr.rel (0) target = $region21
    $region20: #{tpu_custom_call.1} parent=1 // pred_region
      %65 = dma.done [#allocation4], 64
    $region21: #{tpu_custom_call.1} parent=1 // pred_fallthru
      _
    %66 = vsyncpa [#allocation3], 1
    %67 = vsyncpa [#allocation4], 1

</llo_original>
